<compile_context>
chip_gen: v5e
topology: v5e:2x2
jax: 0.10.0
libtpu: 0.0.40
codegen_flags: <defaults>
</compile_context>

<pallas_src>
import functools

import jax
import jax.numpy as jnp
from jax.experimental import pallas as pl
from jax.experimental.pallas import tpu as pltpu

_LANES = 128
_BLOCK_BYTES_TARGET = 4 * 1024 * 1024   # ~4 MiB blocks: big enough to amortize
                                        # ~0.35 us/step overhead, small enough
                                        # for v5e/v7x VMEM budgets.
_VMEM_LIMIT_BYTES = 32 * 1024 * 1024    # safe on v5e (raises 16 MiB default),
                                        # equals default on v6e/v7x.


def _copy_kernel(x_ref, o_ref):
    # Pure vld -> vst identity copy; the reshape itself is metadata only.
    o_ref[...] = x_ref[...]


def _sublane_multiple(dtype) -> int:
    # 8 for 32-bit, 16 for bf16/f16, 32 for int8/fp8 (packed sublanes).
    itemsize = jnp.dtype(dtype).itemsize
    return max(8, 32 // max(1, itemsize))


def _pallas_copy_2d(slab):
    """Identity-copy a lane-dense (R, C) slab through VMEM, tiled over rows."""
    R, C = slab.shape
    itemsize = jnp.dtype(slab.dtype).itemsize
    mult = _sublane_multiple(slab.dtype)

    max_rows = max(1, _BLOCK_BYTES_TARGET // (C * itemsize))
    if max_rows >= R:
        tile_r = R                                   # whole array in one block
    else:
        tile_r = max(mult, (max_rows // mult) * mult)  # keep sublane alignment

    grid = (pl.cdiv(R, tile_r),)
    return pl.pallas_call(
        _copy_kernel,
        out_shape=jax.ShapeDtypeStruct((R, C), slab.dtype),
        grid_spec=pltpu.PrefetchScalarGridSpec(
            num_scalar_prefetch=0,
            grid=grid,
            in_specs=[pl.BlockSpec((tile_r, C), lambda i: (i, 0))],
            out_specs=pl.BlockSpec((tile_r, C), lambda i: (i, 0)),
        ),
        compiler_params=pltpu.CompilerParams(
            dimension_semantics=("parallel",),
            vmem_limit_bytes=_VMEM_LIMIT_BYTES,
        ),
    )(slab)


@functools.partial(jax.jit, static_argnums=(1,))
def _reshape_impl(x, target_shape):
    total = x.size
    if total == 0:
        return jnp.reshape(x, target_shape)

    # Common case: pick the widest lane-dense slab width (multiple of 128) that
    # divides the element count exactly -> no padding / slicing HBM traffic.
    slab_c = None
    for cand in (8192, 4096, 2048, 1024, 512, 256, 128):
        if total % cand == 0:
            slab_c = cand
            break

    if slab_c is not None:
        slab = jnp.reshape(x, (total // slab_c, slab_c))   # metadata-only
        out2d = _pallas_copy_2d(slab)
        return jnp.reshape(out2d, target_shape)            # metadata-only

    # Ragged fallback: element count not a multiple of 128.  Pad minimally to a
    # (R, 128) slab, copy, slice back.  Under jit the pad/slice fuse cheaply.
    pad = (-total) % _LANES
    flat = jnp.reshape(x, (-1,))
    flat = jnp.pad(flat, (0, pad))
    slab = jnp.reshape(flat, (-1, _LANES))
    out2d = _pallas_copy_2d(slab)
    out_flat = jnp.reshape(out2d, (-1,))[:total]
    return jnp.reshape(out_flat, target_shape)


class Reshape:
    """Pallas equivalent of the PyTorch Reshape(nn.Module): x.view(self.shape)."""

    def __init__(self, *args):
        self.shape = args

    def __call__(self, x):
        total = int(x.size)
        shape = list(self.shape)

        neg = [i for i, s in enumerate(shape) if s == -1]
        if len(neg) > 1:
            raise ValueError("only one dimension can be inferred (-1)")
        if neg:
            known = 1
            for s in shape:
                if s != -1:
                    known *= int(s)
            if known == 0 or total % known != 0:
                raise ValueError(
                    f"cannot view tensor of {total} elements as {tuple(self.shape)}"
                )
            shape[neg[0]] = total // known
        else:
            prod = 1
            for s in shape:
                prod *= int(s)
            if prod != total:
                raise ValueError(
                    f"cannot view tensor of {total} elements as {tuple(self.shape)}"
                )

        return _reshape_impl(x, tuple(int(s) for s in shape))


if __name__ == "__main__":
    key = jax.random.PRNGKey(0)
    x = jax.random.normal(key, (2, 4, 16, 16), dtype=jnp.float32)

    # same semantics as torch: Reshape(2, -1)(x) == x.view(2, -1)
    mod = Reshape(2, -1)
    y = mod(x)
    y = jax.block_until_ready(y)

    ref = jnp.reshape(x, (2, -1))
    assert y.shape == ref.shape, (y.shape, ref.shape)
    assert y.dtype == x.dtype
    assert bool(jnp.all(y == ref))

    print("KERNEL_OK")
</pallas_src>

<mosaic_0001>
module attributes {stable_mosaic.version = 11 : i64} {
  func.func @_copy_kernel(%arg0: i32, %arg1: memref<1x2048xf32, #tpu.memory_space<vmem>>, %arg2: memref<1x2048xf32, #tpu.memory_space<vmem>>) attributes {dimension_semantics = [#tpu.dimension_semantics<parallel>], iteration_bounds = array<i64: 1>, scalar_prefetch = 0 : i64, scratch_operands = 0 : i64, tpu.core_type = #tpu.core_type<tc>, window_params = [{transform_indices = @transform_0, window_bounds = array<i64: 1, 2048>}, {transform_indices = @transform_1, window_bounds = array<i64: 1, 2048>}]} {
    %c0 = arith.constant 0 : index
    %c0_0 = arith.constant 0 : index
    %0 = vector.load %arg1[%c0, %c0_0] : memref<1x2048xf32, #tpu.memory_space<vmem>>, vector<1x2048xf32>
    %c0_1 = arith.constant 0 : index
    %c0_2 = arith.constant 0 : index
    %1 = vector.load %arg2[%c0_1, %c0_2] : memref<1x2048xf32, #tpu.memory_space<vmem>>, vector<1x2048xf32>
    tpu.vector_store %arg2[%c0_1, %c0_2], %0 {strides = array<i32>} : memref<1x2048xf32, #tpu.memory_space<vmem>>, vector<1x2048xf32>,
    return
  }
  func.func @transform_0(%arg0: i32) -> (i32, i32) {
    %c0_i32 = arith.constant 0 : i32
    %c0_i32_0 = arith.constant 0 : i32
    return %arg0, %c0_i32 : i32, i32
  }
  func.func @transform_1(%arg0: i32) -> (i32, i32) {
    %c0_i32 = arith.constant 0 : i32
    %c0_i32_0 = arith.constant 0 : i32
    return %arg0, %c0_i32 : i32, i32
  }
}

</mosaic_0001>

<llo_original>
// kernel: _reshape_impl.1
$region0: #{_reshape_impl.1}
  #allocation0 [shape = 'u32[]', space=smem, size = 0x4, offset = 0x4, fixed_abs, tag = 'smem constant byte address 0x4 - core index']
  #allocation1 [shape = 'u32[72,128]{1,0:T(1,128)}', space=vmem, size = 0x9000, scoped, tag = 'internal scratch']
  %s0 = inlined_call_operand.vmem [shape: f32[1,2048], index: 0, kind: input, shape index: {}]
  %s1 = inlined_call_operand.vmem [shape: f32[1,2048], index: 1, kind: output, shape index: {}]
  %s2 = sld [smem:[#allocation0]]
  $region14: #{_reshape_impl.1} parent=0
    _
  %s4 = ssub.s32 1, %s2
  %s5 = scalar_select 0, %s4, %s2
  // Predicated region
  $region2: #{_reshape_impl.1} parent=0 // pred_check
    _
  $region3: #{_reshape_impl.1} parent=0 // pred_check_branch
    %7 = sbr.rel (0) target = $region5
  $region4: #{_reshape_impl.1} parent=0 // pred_region
    _
  $region5: #{_reshape_impl.1} parent=0 // pred_fallthru
    _
  %v8 = vld [vmem:[%s0] sm:$0xff]
  %v9 = vld [vmem:[%s0 + $0x8] sm:$0xff]
  %10 = vst [vmem:[%s1] sm:$0xff] %v8
  %11 = vst [vmem:[%s1 + $0x8] sm:$0xff] %v9
  // Predicated region
  $region6: #{_reshape_impl.1} parent=0 // pred_check
    _
  $region7: #{_reshape_impl.1} parent=0 // pred_check_branch
    %13 = sbr.rel (0) target = $region9
  $region8: #{_reshape_impl.1} parent=0 // pred_region
    _
  $region9: #{_reshape_impl.1} parent=0 // pred_fallthru
    _
  // Predicated region
  $region10: #{_reshape_impl.1} parent=0 // pred_check
    _
  $region11: #{_reshape_impl.1} parent=0 // pred_check_branch
    %15 = sbr.rel (0) target = $region13
  $region12: #{_reshape_impl.1} parent=0 // pred_region
    _
  $region13: #{_reshape_impl.1} parent=0 // pred_fallthru
    _

</llo_original>
